<compile_context>
chip_gen: v7x
topology: tpu7x:2x2x1
jax: 0.10.0
libtpu: 0.0.40
codegen_flags: <defaults>
</compile_context>

<pallas_src>
import functools

import jax
import jax.numpy as jnp
import numpy as np
from jax.experimental import pallas as pl
from jax.experimental.pallas import tpu as pltpu

HIDDEN = 256  # fixed by the module definition (nn.Linear(..., 256))


def _soft_q_kernel(idx_ref, present_ref, b3_ref,                 # SMEM
                   xa_ref, w1_ref, b12_ref, w2_ref, w3t_ref,     # VMEM
                   out_ref):
    num_options = w1_ref.shape[0]

    # Pallas does not zero output buffers: explicit init before guarded stores.
    out_ref[...] = jnp.zeros_like(out_ref)

    for i in range(num_options):                   # num_options is small; unrolled
        # TODO(synk): PyTorch raises if option i never occurs in `o`; here a
        # missing option is a guarded no-op (skips both matmuls and the store).
        @pl.when(present_ref[i] != 0)
        def _(i=i):
            idx = idx_ref[i]                                       # scalar from SMEM
            v = xa_ref[pl.ds(idx, 1), :].astype(jnp.bfloat16)      # fused gather (1, D_in)
            b12_i = b12_ref[i]                                     # (2, 256) f32

            # fc1 + relu  (bf16 MXU matmul, f32 accumulation)
            h1 = jnp.dot(v, w1_ref[i],
                         preferred_element_type=jnp.float32) + b12_i[0:1, :]
            h1 = jnp.maximum(h1, 0.0)

            # fc2 + relu
            h2 = jnp.dot(h1.astype(jnp.bfloat16), w2_ref[i],
                         preferred_element_type=jnp.float32) + b12_i[1:2, :]
            h2 = jnp.maximum(h2, 0.0)

            # fc3 as lane-dense row: VPU mul + XLU lane reduce (no (256,1) column).
            q = jnp.sum(h2 * w3t_ref[i].astype(jnp.float32),
                        axis=-1, keepdims=True) + b3_ref[i]        # (1, 1)

            # Fused scatter: y[idx, 0] = q  (O(1) dynamic store).
            out_ref[pl.ds(idx, 1), :] = q


@functools.partial(jax.jit, static_argnums=(4,))
def soft_q_forward(params, x, a, o, num_options):
    """Pallas implementation of SoftQNetwork.forward(x, a, o)."""
    w1, b12, w2, w3t, b3 = params
    B = x.shape[0]
    xa = jnp.concatenate([x, a], axis=1).astype(jnp.float32)        # (B, D_in)

    # PyTorch: indices = (o == i).nonzero()[0]  -> first matching batch index.
    eq = o[None, :] == jnp.arange(num_options, dtype=o.dtype)[:, None]
    first_idx = jnp.argmax(eq, axis=1).astype(jnp.int32)            # (num_options,)
    present = jnp.any(eq, axis=1).astype(jnp.int32)                 # (num_options,)

    smem = pl.BlockSpec(memory_space=pltpu.MemorySpace.SMEM)
    vmem = pl.BlockSpec(memory_space=pltpu.MemorySpace.VMEM)
    # Total VMEM residency ~0.45 MiB (bf16 weights) + ~3 KiB biases/xa:
    # no tiling / multi-buffering needed on any generation (v5e/v6e/v7x).
    return pl.pallas_call(
        _soft_q_kernel,
        out_shape=jax.ShapeDtypeStruct((B, 1), jnp.float32),
        in_specs=[smem, smem, smem,            # first_idx, present, b3
                  vmem, vmem, vmem, vmem, vmem],
        out_specs=vmem,
    )(first_idx, present, b3, xa, w1, b12, w2, w3t)


def soft_q_forward_ref(params, x, a, o, num_options):
    """Pure-JAX reference mirroring the PyTorch forward (same bf16 weight quantization)."""
    w1, b12, w2, w3t, b3 = params
    xa = jnp.concatenate([x, a], axis=1).astype(jnp.float32)
    y = jnp.zeros((x.shape[0], 1), jnp.float32)
    for i in range(num_options):
        idx = jnp.argmax(o == i)
        v = xa[idx][None, :].astype(jnp.bfloat16)
        h1 = jnp.maximum(
            jnp.dot(v, w1[i], preferred_element_type=jnp.float32) + b12[i, 0:1, :], 0.0)
        h2 = jnp.maximum(
            jnp.dot(h1.astype(jnp.bfloat16), w2[i],
                    preferred_element_type=jnp.float32) + b12[i, 1:2, :], 0.0)
        q = jnp.sum(h2 * w3t[i].astype(jnp.float32), axis=-1, keepdims=True) + b3[i]
        y = y.at[idx, 0].set(q[0, 0])
    return y


def init_params(key, num_options, d_in, hidden=HIDDEN):
    """Deterministic Linear-style init (uniform +/- 1/sqrt(fan_in)).

    Weights are stored in bfloat16 (halves HBM->VMEM bytes for this
    DMA/latency-bound kernel); biases stay float32.
    """
    ks = jax.random.split(key, 6)

    def u(k, shape, fan_in, dtype):
        bound = 1.0 / np.sqrt(fan_in)
        return jax.random.uniform(k, shape, jnp.float32, -bound, bound).astype(dtype)

    w1 = u(ks[0], (num_options, d_in, hidden), d_in, jnp.bfloat16)
    b1 = u(ks[1], (num_options, 1, hidden), d_in, jnp.float32)
    w2 = u(ks[2], (num_options, hidden, hidden), hidden, jnp.bfloat16)
    b2 = u(ks[3], (num_options, 1, hidden), hidden, jnp.float32)
    # fc3 weight stored lane-dense as its PyTorch-native (out=1, in=hidden) row.
    w3t = u(ks[4], (num_options, 1, hidden), hidden, jnp.bfloat16)
    b3 = u(ks[5], (num_options,), hidden, jnp.float32)
    b12 = jnp.concatenate([b1, b2], axis=1)        # (num_options, 2, hidden) f32
    return (w1, b12, w2, w3t, b3)


if __name__ == "__main__":
    B, obs_dim, act_dim, num_options = 8, 17, 6, 3

    key = jax.random.PRNGKey(0)
    kx, ka, kp = jax.random.split(key, 3)
    x = jax.random.normal(kx, (B, obs_dim), jnp.float32)
    a = jax.random.normal(ka, (B, act_dim), jnp.float32)
    # Every option appears at least once (as the reference code requires).
    o = jnp.array([0, 1, 2, 0, 1, 2, 0, 1], jnp.int32)

    params = init_params(kp, num_options, obs_dim + act_dim)

    y = jax.block_until_ready(soft_q_forward(params, x, a, o, num_options))
    y_ref = soft_q_forward_ref(params, x, a, o, num_options)

    assert y.shape == (B, 1) and y.dtype == jnp.float32
    assert jnp.allclose(y, y_ref, atol=1e-3, rtol=1e-3)
    print("KERNEL_OK")
</pallas_src>

<mosaic_0001>
module attributes {stable_mosaic.version = 11 : i64} {
  func.func @_soft_q_kernel(%arg0: memref<3xi32, #tpu.memory_space<smem>>, %arg1: memref<3xi32, #tpu.memory_space<smem>>, %arg2: memref<3xf32, #tpu.memory_space<smem>>, %arg3: memref<8x23xf32, #tpu.memory_space<vmem>>, %arg4: memref<3x23x256xbf16, #tpu.memory_space<vmem>>, %arg5: memref<3x2x256xf32, #tpu.memory_space<vmem>>, %arg6: memref<3x256x256xbf16, #tpu.memory_space<vmem>>, %arg7: memref<3x1x256xbf16, #tpu.memory_space<vmem>>, %arg8: memref<8x1xf32, #tpu.memory_space<vmem>>) attributes {dimension_semantics = [], scalar_prefetch = 0 : i64, scratch_operands = 0 : i64, tpu.core_type = #tpu.core_type<tc>} {
    %cst = arith.constant 0.000000e+00 : f32
    %0 = vector.broadcast %cst : f32 to vector<8x1xf32>
    %c0 = arith.constant 0 : index
    %c0_0 = arith.constant 0 : index
    %1 = vector.load %arg8[%c0, %c0_0] : memref<8x1xf32, #tpu.memory_space<vmem>>, vector<8x1xf32>
    tpu.vector_store %arg8[%c0, %c0_0], %0 {strides = array<i32>} : memref<8x1xf32, #tpu.memory_space<vmem>>, vector<8x1xf32>,
    %c0_1 = arith.constant 0 : index
    %2 = memref.load %arg1[%c0_1] : memref<3xi32, #tpu.memory_space<smem>>
    %c0_i32 = arith.constant 0 : i32
    %3 = arith.cmpi ne, %2, %c0_i32 : i32
    %4 = arith.extui %3 : i1 to i32
    %c0_i32_2 = arith.constant 0 : i32
    %5 = arith.cmpi ne, %4, %c0_i32_2 : i32
    scf.if %5 {
      %c0_7 = arith.constant 0 : index
      %14 = memref.load %arg0[%c0_7] : memref<3xi32, #tpu.memory_space<smem>>
      %15 = arith.index_cast %14 : i32 to index
      %c0_8 = arith.constant 0 : index
      %16 = vector.load %arg3[%15, %c0_8] : memref<8x23xf32, #tpu.memory_space<vmem>>, vector<1x23xf32>
      %17 = arith.truncf %16 : vector<1x23xf32> to vector<1x23xbf16>
      %c0_9 = arith.constant 0 : index
      %c0_10 = arith.constant 0 : index
      %c0_11 = arith.constant 0 : index
      %18 = vector.load %arg5[%c0_9, %c0_10, %c0_11] : memref<3x2x256xf32, #tpu.memory_space<vmem>>, vector<1x2x256xf32>
      %19 = vector.shape_cast %18 : vector<1x2x256xf32> to vector<2x256xf32>
      %c0_12 = arith.constant 0 : index
      %c0_13 = arith.constant 0 : index
      %c0_14 = arith.constant 0 : index
      %20 = vector.load %arg4[%c0_12, %c0_13, %c0_14] : memref<3x23x256xbf16, #tpu.memory_space<vmem>>, vector<1x23x256xbf16>
      %21 = vector.shape_cast %20 : vector<1x23x256xbf16> to vector<23x256xbf16>
      %cst_15 = arith.constant dense<0.000000e+00> : vector<1x256xf32>
      %22 = tpu.matmul %17, %21, %cst_15 {dimension_numbers = #tpu.dot_dimension_numbers<[1], [0], [0], [1], [0, 0, 1, 1], [], []>} : vector<1x23xbf16>, vector<23x256xbf16>, vector<1x256xf32> -> vector<1x256xf32>
      %23 = vector.extract_strided_slice %19 {offsets = [0, 0], sizes = [1, 256], strides = [1, 1]} : vector<2x256xf32> to vector<1x256xf32>
      %24 = arith.addf %22, %23 : vector<1x256xf32>
      %cst_16 = arith.constant 0.000000e+00 : f32
      %25 = vector.broadcast %cst_16 : f32 to vector<1x256xf32>
      %26 = arith.maximumf %24, %25 : vector<1x256xf32>
      %27 = arith.truncf %26 : vector<1x256xf32> to vector<1x256xbf16>
      %c0_17 = arith.constant 0 : index
      %c0_18 = arith.constant 0 : index
      %c0_19 = arith.constant 0 : index
      %28 = vector.load %arg6[%c0_17, %c0_18, %c0_19] : memref<3x256x256xbf16, #tpu.memory_space<vmem>>, vector<1x256x256xbf16>
      %29 = vector.shape_cast %28 : vector<1x256x256xbf16> to vector<256x256xbf16>
      %cst_20 = arith.constant dense<0.000000e+00> : vector<1x256xf32>
      %30 = tpu.matmul %27, %29, %cst_20 {dimension_numbers = #tpu.dot_dimension_numbers<[1], [0], [0], [1], [0, 0, 1, 1], [], []>} : vector<1x256xbf16>, vector<256x256xbf16>, vector<1x256xf32> -> vector<1x256xf32>
      %31 = vector.extract_strided_slice %19 {offsets = [1, 0], sizes = [1, 256], strides = [1, 1]} : vector<2x256xf32> to vector<1x256xf32>
      %32 = arith.addf %30, %31 : vector<1x256xf32>
      %cst_21 = arith.constant 0.000000e+00 : f32
      %33 = vector.broadcast %cst_21 : f32 to vector<1x256xf32>
      %34 = arith.maximumf %32, %33 : vector<1x256xf32>
      %c0_22 = arith.constant 0 : index
      %c0_23 = arith.constant 0 : index
      %c0_24 = arith.constant 0 : index
      %35 = vector.load %arg7[%c0_22, %c0_23, %c0_24] : memref<3x1x256xbf16, #tpu.memory_space<vmem>>, vector<1x1x256xbf16>
      %36 = vector.shape_cast %35 : vector<1x1x256xbf16> to vector<1x256xbf16>
      %37 = arith.extf %36 : vector<1x256xbf16> to vector<1x256xf32>
      %38 = arith.mulf %34, %37 : vector<1x256xf32>
      %cst_25 = arith.constant dense<0.000000e+00> : vector<1xf32>
      %39 = vector.multi_reduction <add>, %38, %cst_25 [1] : vector<1x256xf32> to vector<1xf32>
      %40 = vector.shape_cast %39 : vector<1xf32> to vector<1x1xf32>
      %c0_26 = arith.constant 0 : index
      %41 = memref.load %arg2[%c0_26] : memref<3xf32, #tpu.memory_space<smem>>
      %42 = vector.broadcast %41 : f32 to vector<1x1xf32>
      %43 = arith.addf %40, %42 : vector<1x1xf32>
      %44 = arith.index_cast %14 : i32 to index
      %c0_27 = arith.constant 0 : index
      %45 = vector.load %arg8[%44, %c0_27] : memref<8x1xf32, #tpu.memory_space<vmem>>, vector<1x1xf32>
      tpu.vector_store %arg8[%44, %c0_27], %43 {strides = array<i32>} : memref<8x1xf32, #tpu.memory_space<vmem>>, vector<1x1xf32>,
    } else {
    }
    %c1 = arith.constant 1 : index
    %6 = memref.load %arg1[%c1] : memref<3xi32, #tpu.memory_space<smem>>
    %c0_i32_3 = arith.constant 0 : i32
    %7 = arith.cmpi ne, %6, %c0_i32_3 : i32
    %8 = arith.extui %7 : i1 to i32
    %c0_i32_4 = arith.constant 0 : i32
    %9 = arith.cmpi ne, %8, %c0_i32_4 : i32
    scf.if %9 {
      %c1_7 = arith.constant 1 : index
      %14 = memref.load %arg0[%c1_7] : memref<3xi32, #tpu.memory_space<smem>>
      %15 = arith.index_cast %14 : i32 to index
      %c0_8 = arith.constant 0 : index
      %16 = vector.load %arg3[%15, %c0_8] : memref<8x23xf32, #tpu.memory_space<vmem>>, vector<1x23xf32>
      %17 = arith.truncf %16 : vector<1x23xf32> to vector<1x23xbf16>
      %c1_9 = arith.constant 1 : index
      %c0_10 = arith.constant 0 : index
      %c0_11 = arith.constant 0 : index
      %18 = vector.load %arg5[%c1_9, %c0_10, %c0_11] : memref<3x2x256xf32, #tpu.memory_space<vmem>>, vector<1x2x256xf32>
      %19 = vector.shape_cast %18 : vector<1x2x256xf32> to vector<2x256xf32>
      %c1_12 = arith.constant 1 : index
      %c0_13 = arith.constant 0 : index
      %c0_14 = arith.constant 0 : index
      %20 = vector.load %arg4[%c1_12, %c0_13, %c0_14] : memref<3x23x256xbf16, #tpu.memory_space<vmem>>, vector<1x23x256xbf16>
      %21 = vector.shape_cast %20 : vector<1x23x256xbf16> to vector<23x256xbf16>
      %cst_15 = arith.constant dense<0.000000e+00> : vector<1x256xf32>
      %22 = tpu.matmul %17, %21, %cst_15 {dimension_numbers = #tpu.dot_dimension_numbers<[1], [0], [0], [1], [0, 0, 1, 1], [], []>} : vector<1x23xbf16>, vector<23x256xbf16>, vector<1x256xf32> -> vector<1x256xf32>
      %23 = vector.extract_strided_slice %19 {offsets = [0, 0], sizes = [1, 256], strides = [1, 1]} : vector<2x256xf32> to vector<1x256xf32>
      %24 = arith.addf %22, %23 : vector<1x256xf32>
      %cst_16 = arith.constant 0.000000e+00 : f32
      %25 = vector.broadcast %cst_16 : f32 to vector<1x256xf32>
      %26 = arith.maximumf %24, %25 : vector<1x256xf32>
      %27 = arith.truncf %26 : vector<1x256xf32> to vector<1x256xbf16>
      %c1_17 = arith.constant 1 : index
      %c0_18 = arith.constant 0 : index
      %c0_19 = arith.constant 0 : index
      %28 = vector.load %arg6[%c1_17, %c0_18, %c0_19] : memref<3x256x256xbf16, #tpu.memory_space<vmem>>, vector<1x256x256xbf16>
      %29 = vector.shape_cast %28 : vector<1x256x256xbf16> to vector<256x256xbf16>
      %cst_20 = arith.constant dense<0.000000e+00> : vector<1x256xf32>
      %30 = tpu.matmul %27, %29, %cst_20 {dimension_numbers = #tpu.dot_dimension_numbers<[1], [0], [0], [1], [0, 0, 1, 1], [], []>} : vector<1x256xbf16>, vector<256x256xbf16>, vector<1x256xf32> -> vector<1x256xf32>
      %31 = vector.extract_strided_slice %19 {offsets = [1, 0], sizes = [1, 256], strides = [1, 1]} : vector<2x256xf32> to vector<1x256xf32>
      %32 = arith.addf %30, %31 : vector<1x256xf32>
      %cst_21 = arith.constant 0.000000e+00 : f32
      %33 = vector.broadcast %cst_21 : f32 to vector<1x256xf32>
      %34 = arith.maximumf %32, %33 : vector<1x256xf32>
      %c1_22 = arith.constant 1 : index
      %c0_23 = arith.constant 0 : index
      %c0_24 = arith.constant 0 : index
      %35 = vector.load %arg7[%c1_22, %c0_23, %c0_24] : memref<3x1x256xbf16, #tpu.memory_space<vmem>>, vector<1x1x256xbf16>
      %36 = vector.shape_cast %35 : vector<1x1x256xbf16> to vector<1x256xbf16>
      %37 = arith.extf %36 : vector<1x256xbf16> to vector<1x256xf32>
      %38 = arith.mulf %34, %37 : vector<1x256xf32>
      %cst_25 = arith.constant dense<0.000000e+00> : vector<1xf32>
      %39 = vector.multi_reduction <add>, %38, %cst_25 [1] : vector<1x256xf32> to vector<1xf32>
      %40 = vector.shape_cast %39 : vector<1xf32> to vector<1x1xf32>
      %c1_26 = arith.constant 1 : index
      %41 = memref.load %arg2[%c1_26] : memref<3xf32, #tpu.memory_space<smem>>
      %42 = vector.broadcast %41 : f32 to vector<1x1xf32>
      %43 = arith.addf %40, %42 : vector<1x1xf32>
      %44 = arith.index_cast %14 : i32 to index
      %c0_27 = arith.constant 0 : index
      %45 = vector.load %arg8[%44, %c0_27] : memref<8x1xf32, #tpu.memory_space<vmem>>, vector<1x1xf32>
      tpu.vector_store %arg8[%44, %c0_27], %43 {strides = array<i32>} : memref<8x1xf32, #tpu.memory_space<vmem>>, vector<1x1xf32>,
    } else {
    }
    %c2 = arith.constant 2 : index
    %10 = memref.load %arg1[%c2] : memref<3xi32, #tpu.memory_space<smem>>
    %c0_i32_5 = arith.constant 0 : i32
    %11 = arith.cmpi ne, %10, %c0_i32_5 : i32
    %12 = arith.extui %11 : i1 to i32
    %c0_i32_6 = arith.constant 0 : i32
    %13 = arith.cmpi ne, %12, %c0_i32_6 : i32
    scf.if %13 {
      %c2_7 = arith.constant 2 : index
      %14 = memref.load %arg0[%c2_7] : memref<3xi32, #tpu.memory_space<smem>>
      %15 = arith.index_cast %14 : i32 to index
      %c0_8 = arith.constant 0 : index
      %16 = vector.load %arg3[%15, %c0_8] : memref<8x23xf32, #tpu.memory_space<vmem>>, vector<1x23xf32>
      %17 = arith.truncf %16 : vector<1x23xf32> to vector<1x23xbf16>
      %c2_9 = arith.constant 2 : index
      %c0_10 = arith.constant 0 : index
      %c0_11 = arith.constant 0 : index
      %18 = vector.load %arg5[%c2_9, %c0_10, %c0_11] : memref<3x2x256xf32, #tpu.memory_space<vmem>>, vector<1x2x256xf32>
      %19 = vector.shape_cast %18 : vector<1x2x256xf32> to vector<2x256xf32>
      %c2_12 = arith.constant 2 : index
      %c0_13 = arith.constant 0 : index
      %c0_14 = arith.constant 0 : index
      %20 = vector.load %arg4[%c2_12, %c0_13, %c0_14] : memref<3x23x256xbf16, #tpu.memory_space<vmem>>, vector<1x23x256xbf16>
      %21 = vector.shape_cast %20 : vector<1x23x256xbf16> to vector<23x256xbf16>
      %cst_15 = arith.constant dense<0.000000e+00> : vector<1x256xf32>
      %22 = tpu.matmul %17, %21, %cst_15 {dimension_numbers = #tpu.dot_dimension_numbers<[1], [0], [0], [1], [0, 0, 1, 1], [], []>} : vector<1x23xbf16>, vector<23x256xbf16>, vector<1x256xf32> -> vector<1x256xf32>
      %23 = vector.extract_strided_slice %19 {offsets = [0, 0], sizes = [1, 256], strides = [1, 1]} : vector<2x256xf32> to vector<1x256xf32>
      %24 = arith.addf %22, %23 : vector<1x256xf32>
      %cst_16 = arith.constant 0.000000e+00 : f32
      %25 = vector.broadcast %cst_16 : f32 to vector<1x256xf32>
      %26 = arith.maximumf %24, %25 : vector<1x256xf32>
      %27 = arith.truncf %26 : vector<1x256xf32> to vector<1x256xbf16>
      %c2_17 = arith.constant 2 : index
      %c0_18 = arith.constant 0 : index
      %c0_19 = arith.constant 0 : index
      %28 = vector.load %arg6[%c2_17, %c0_18, %c0_19] : memref<3x256x256xbf16, #tpu.memory_space<vmem>>, vector<1x256x256xbf16>
      %29 = vector.shape_cast %28 : vector<1x256x256xbf16> to vector<256x256xbf16>
      %cst_20 = arith.constant dense<0.000000e+00> : vector<1x256xf32>
      %30 = tpu.matmul %27, %29, %cst_20 {dimension_numbers = #tpu.dot_dimension_numbers<[1], [0], [0], [1], [0, 0, 1, 1], [], []>} : vector<1x256xbf16>, vector<256x256xbf16>, vector<1x256xf32> -> vector<1x256xf32>
      %31 = vector.extract_strided_slice %19 {offsets = [1, 0], sizes = [1, 256], strides = [1, 1]} : vector<2x256xf32> to vector<1x256xf32>
      %32 = arith.addf %30, %31 : vector<1x256xf32>
      %cst_21 = arith.constant 0.000000e+00 : f32
      %33 = vector.broadcast %cst_21 : f32 to vector<1x256xf32>
      %34 = arith.maximumf %32, %33 : vector<1x256xf32>
      %c2_22 = arith.constant 2 : index
      %c0_23 = arith.constant 0 : index
      %c0_24 = arith.constant 0 : index
      %35 = vector.load %arg7[%c2_22, %c0_23, %c0_24] : memref<3x1x256xbf16, #tpu.memory_space<vmem>>, vector<1x1x256xbf16>
      %36 = vector.shape_cast %35 : vector<1x1x256xbf16> to vector<1x256xbf16>
      %37 = arith.extf %36 : vector<1x256xbf16> to vector<1x256xf32>
      %38 = arith.mulf %34, %37 : vector<1x256xf32>
      %cst_25 = arith.constant dense<0.000000e+00> : vector<1xf32>
      %39 = vector.multi_reduction <add>, %38, %cst_25 [1] : vector<1x256xf32> to vector<1xf32>
      %40 = vector.shape_cast %39 : vector<1xf32> to vector<1x1xf32>
      %c2_26 = arith.constant 2 : index
      %41 = memref.load %arg2[%c2_26] : memref<3xf32, #tpu.memory_space<smem>>
      %42 = vector.broadcast %41 : f32 to vector<1x1xf32>
      %43 = arith.addf %40, %42 : vector<1x1xf32>
      %44 = arith.index_cast %14 : i32 to index
      %c0_27 = arith.constant 0 : index
      %45 = vector.load %arg8[%44, %c0_27] : memref<8x1xf32, #tpu.memory_space<vmem>>, vector<1x1xf32>
      tpu.vector_store %arg8[%44, %c0_27], %43 {strides = array<i32>} : memref<8x1xf32, #tpu.memory_space<vmem>>, vector<1x1xf32>,
    } else {
    }
    return
  }
}

</mosaic_0001>

<llo_original>
// kernel: soft_q_forward.1
$region0: #{soft_q_forward.1}
  #allocation0 [shape = 'u32[]', space=smem, size = 0x4, offset = 0x4, fixed_abs, tag = 'smem constant byte address 0x4 - core index']
  #allocation1 [shape = 'u32[144,128]{1,0:T(1,128)}', space=vmem, size = 0x12000, scoped, tag = 'internal scratch']
  %s0 = inlined_call_operand.vmem [shape: s32[3], index: 0, kind: input, shape index: {}]
  %s1 = inlined_call_operand.vmem [shape: s32[3], index: 1, kind: input, shape index: {}]
  %s2 = inlined_call_operand.vmem [shape: f32[3], index: 2, kind: input, shape index: {}]
  %s3 = inlined_call_operand.vmem [shape: f32[8,23], index: 3, kind: input, shape index: {}]
  %s4 = inlined_call_operand.hbm [shape: bf16[3,23,256], index: 4, kind: input, shape index: {}]
  %s5 = inlined_call_operand.vmem [shape: f32[3,2,256], index: 5, kind: input, shape index: {}]
  %s6 = inlined_call_operand.hbm [shape: bf16[3,256,256], index: 6, kind: input, shape index: {}]
  %s7 = inlined_call_operand.vmem [shape: bf16[3,1,256], index: 7, kind: input, shape index: {}]
  %s8 = inlined_call_operand.vmem [shape: f32[8,1], index: 8, kind: output, shape index: {}]
  %s9 = sld [smem:[#allocation0]]
  $region74: #{soft_q_forward.1} parent=0
    _
  %s11 = ssub.s32 1, %s9
  %s12 = scalar_select 0, %s11, %s9
  $region1: #{soft_q_forward.1} parent=0
    #allocation2 [shape = 'u8[512]{0}', space=smem, size = 0x200, scoped, tag = 'input window, operand 0, single buffered']
    #allocation3 [shape = 's32[1]{0}', space=sflag, size = 0x4, scoped, tag = 'scoped memory for soft_q_forward.1']
    #allocation4 [shape = 's32[1]{0}', space=sflag, size = 0x4, scoped, tag = 'scoped memory for soft_q_forward.1']
    #allocation5 [shape = 'u8[512]{0}', space=smem, size = 0x200, scoped, tag = 'input window, operand 1, single buffered']
    #allocation6 [shape = 's32[1]{0}', space=sflag, size = 0x4, scoped, tag = 'scoped memory for soft_q_forward.1']
    #allocation7 [shape = 'u8[512]{0}', space=smem, size = 0x200, scoped, tag = 'input window, operand 2, single buffered']
    #allocation8 [shape = 'u8[36864]{0}', space=vmem, size = 0x9000, scoped, tag = 'input window, operand 4, single buffered']
    #allocation9 [shape = 'u8[393216]{0}', space=vmem, size = 0x60000, scoped, tag = 'input window, operand 6, single buffered']
    #allocation10 [shape = 's32[1]{0}', space=sflag, size = 0x4, scoped, tag = 'scoped memory for soft_q_forward.1']
    %13 = vsyncpa [#allocation4], 0
    %14 = vsyncpa [#allocation6], 0
    %15 = vsyncpa [#allocation3], 0
    %16 = vsyncpa [#allocation10], 0
    // Predicated region
    $region2: #{soft_q_forward.1} parent=1 // pred_check
      _
    $region3: #{soft_q_forward.1} parent=1 // pred_check_branch
      %18 = sbr.rel (0) target = $region5
    $region4: #{soft_q_forward.1} parent=1 // pred_region
      %s20 = ssub.s32 16, 16
      %21 = vsyncadd [#allocation4], %s20
      %s23 = sshll.u32 %s0, 4
      %s24 = int_to_ptr.vmem [resolvable:$true] %s23
      %26 = dma.vmem_to_smem %s24, 16, [#allocation2], [#allocation4]
    $region5: #{soft_q_forward.1} parent=1 // pred_fallthru
      _
    // Predicated region
    $region6: #{soft_q_forward.1} parent=1 // pred_check
      _
    $region7: #{soft_q_forward.1} parent=1 // pred_check_branch
      %28 = sbr.rel (0) target = $region9
    $region8: #{soft_q_forward.1} parent=1 // pred_region
      %s30 = ssub.s32 16, 16
      %31 = vsyncadd [#allocation6], %s30
      %s33 = sshll.u32 %s1, 4
      %s34 = int_to_ptr.vmem [resolvable:$true] %s33
      %36 = dma.vmem_to_smem %s34, 16, [#allocation5], [#allocation6]
    $region9: #{soft_q_forward.1} parent=1 // pred_fallthru
      _
    // Predicated region
    $region10: #{soft_q_forward.1} parent=1 // pred_check
      _
    $region11: #{soft_q_forward.1} parent=1 // pred_check_branch
      %38 = sbr.rel (0) target = $region13
    $region12: #{soft_q_forward.1} parent=1 // pred_region
      %s40 = ssub.s32 16, 16
      %41 = vsyncadd [#allocation6], %s40
      %s43 = sshll.u32 %s2, 4
      %s44 = int_to_ptr.vmem [resolvable:$true] %s43
      %46 = dma.vmem_to_smem %s44, 16, [#allocation7], [#allocation6]
    $region13: #{soft_q_forward.1} parent=1 // pred_fallthru
      _
    // Predicated region
    $region14: #{soft_q_forward.1} parent=1 // pred_check
      _
    $region15: #{soft_q_forward.1} parent=1 // pred_check_branch
      %48 = sbr.rel (0) target = $region17
    $region16: #{soft_q_forward.1} parent=1 // pred_region
      _
    $region17: #{soft_q_forward.1} parent=1 // pred_fallthru
      _
    // Predicated region
    $region18: #{soft_q_forward.1} parent=1 // pred_check
      _
    $region19: #{soft_q_forward.1} parent=1 // pred_check_branch
      %50 = sbr.rel (0) target = $region21
    $region20: #{soft_q_forward.1} parent=1 // pred_region
      %s52 = ssub.s32 1152, 1152
      %53 = vsyncadd [#allocation3], %s52
      %s54 = sshll.u32 [#allocation8], 4
      %s55 = int_to_ptr.vmem [resolvable:$true] %s54
      %60 = dma.hbm_to_vmem [thread:$0]  %s4, 1152, %s55, [#allocation3], 128, 128, 8
    $region21: #{soft_q_forward.1} parent=1 // pred_fallthru
      _
    // Predicated region
    $region22: #{soft_q_forward.1} parent=1 // pred_check
      _
    $region23: #{soft_q_forward.1} parent=1 // pred_check_branch
      %62 = sbr.rel (0) target = $region25
    $region24: #{soft_q_forward.1} parent=1 // pred_region
      _
    $region25: #{soft_q_forward.1} parent=1 // pred_fallthru
      _
    // Predicated region
    $region26: #{soft_q_forward.1} parent=1 // pred_check
      _
    $region27: #{soft_q_forward.1} parent=1 // pred_check_branch
      %64 = sbr.rel (0) target = $region29
    $region28: #{soft_q_forward.1} parent=1 // pred_region
      %s66 = ssub.s32 12288, 12288
      %67 = vsyncadd [#allocation10], %s66
      %s68 = sshll.u32 [#allocation9], 4
      %s69 = int_to_ptr.vmem [resolvable:$true] %s68
      %74 = dma.hbm_to_vmem [thread:$0]  %s6, 12288, %s69, [#allocation10], 128, 128, 8
    $region29: #{soft_q_forward.1} parent=1 // pred_fallthru
      _
    // Predicated region
    $region30: #{soft_q_forward.1} parent=1 // pred_check
      _
    $region31: #{soft_q_forward.1} parent=1 // pred_check_branch
      %76 = sbr.rel (0) target = $region33
    $region32: #{soft_q_forward.1} parent=1 // pred_region
      _
    $region33: #{soft_q_forward.1} parent=1 // pred_fallthru
      _
    // Predicated region
    $region34: #{soft_q_forward.1} parent=1 // pred_check
      _
    $region35: #{soft_q_forward.1} parent=1 // pred_check_branch
      %78 = sbr.rel (0) target = $region37
    $region36: #{soft_q_forward.1} parent=1 // pred_region
      %79 = dma.done [#allocation4], 16
    $region37: #{soft_q_forward.1} parent=1 // pred_fallthru
      _
    // Predicated region
    $region38: #{soft_q_forward.1} parent=1 // pred_check
      _
    $region39: #{soft_q_forward.1} parent=1 // pred_check_branch
      %81 = sbr.rel (0) target = $region41
    $region40: #{soft_q_forward.1} parent=1 // pred_region
      %82 = dma.done [#allocation6], 16
    $region41: #{soft_q_forward.1} parent=1 // pred_fallthru
      _
    // Predicated region
    $region42: #{soft_q_forward.1} parent=1 // pred_check
      _
    $region43: #{soft_q_forward.1} parent=1 // pred_check_branch
      %84 = sbr.rel (0) target = $region45
    $region44: #{soft_q_forward.1} parent=1 // pred_region
      %85 = dma.done [#allocation6], 16
    $region45: #{soft_q_forward.1} parent=1 // pred_fallthru
      _
    // Predicated region
    $region46: #{soft_q_forward.1} parent=1 // pred_check
      _
    $region47: #{soft_q_forward.1} parent=1 // pred_check_branch
      %87 = sbr.rel (0) target = $region49
    $region48: #{soft_q_forward.1} parent=1 // pred_region
      %88 = dma.done [#allocation3], 1152
    $region49: #{soft_q_forward.1} parent=1 // pred_fallthru
      _
    // Predicated region
    $region50: #{soft_q_forward.1} parent=1 // pred_check
      _
    $region51: #{soft_q_forward.1} parent=1 // pred_check_branch
      %90 = sbr.rel (0) target = $region53
    $region52: #{soft_q_forward.1} parent=1 // pred_region
      %91 = dma.done [#allocation10], 12288
    $region53: #{soft_q_forward.1} parent=1 // pred_fallthru
      _
    %92 = sfence
    %vm94 = vcmask 7168
    %95 = vst.msk [vmem:[%s8] sm:$0xff] %vm94, 0.0
    %s96 = sld [smem:[#allocation5]]
    %p97 = scmp.ne.s32.totalorder %s96, 0
    // Predicated region
    $region54: #{soft_q_forward.1} parent=1 // pred_check
      %p98 = pneg %p97
    $region55: #{soft_q_forward.1} parent=1 // pred_check_branch
      %100 = sbr.rel (%p98) target = $region57
    $region56: #{soft_q_forward.1} parent=1 // pred_region
      %s101 = sld [smem:[#allocation2]]
      %s102 = scalar_lea.vmem %s3, %s101
      %v103 = vld [vmem:[%s102] sm:$0x1]
      %v104 = vpack.c.bf16 %v103, %v103
      %v105 = vld [vmem:[%s5] sm:$0xf]
      %v106 = vld [vmem:[#allocation8] sm:$0xff]
      %v107 = vld [vmem:[#allocation8 + $0x8] sm:$0xff]
      %v108 = vld [vmem:[#allocation8 + $0x10] sm:$0xff]
      %v112 = vunpack.c.l.b16 %v106
      %v113 = vunpack.c.h.b16 %v106
      %v114 = vunpack.c.l.b16 %v107
      %v115 = vunpack.c.h.b16 %v107
      %v116 = vunpack.c.l.b16 %v108
      %v117 = vunpack.c.h.b16 %v108
      %v118 = vpack.c.b16 %v114, %v112
      %v119 = vpack.c.b16 %v115, %v113
      %v120 = vpack.c.b16 %v116, %v116
      %v121 = vpack.c.b16 %v117, %v117
      %v125 = vlaneseq
      %v126 = vshrl.u32 %v125, 7
      %v127 = vsub.s32 0, %v126
      %v128 = vrot.slane %v105, %v127
      %v129 = vlaneseq
      %v130 = vshrl.u32 %v129, 7
      %v131 = vsub.s32 2, %v130
      %v132 = vrot.slane %v105, %v131
      %vm135 = vcmask 187392
      %v137 = vsel %vm135, %v104, 0
      %vm139 = vcmask 1042432
      %vm140 = vcmask 1043456
      %v141 = vsel %vm139, 4294967295, 65535
      %v142 = vsel %vm140, %v141, 0
      %v144 = vand.u32 %v120, %v142
      %v147 = vand.u32 %v121, %v142
      %149 = vmatprep.subr.bf16.mxu0 %v119
      %150 = vmatpush1.bf16.msra.mxu0 %v118
      %151 = vmatprep.subr.bf16.mxu0 %v147
      %152 = vmatpush1.bf16.msra.mxu0 %v144
      %153 = vmatprep.subr.bf16.mxu0 0
      %154 = vmatpush1.bf16.msra.mxu0 0
      %155 = vmatprep.subr.bf16.mxu0 0
      %156 = vmatpush1.bf16.msra.mxu0 0
      %157 = vmatprep.subr.bf16.mxu0 0
      %158 = vmatpush1.bf16.msra.mxu0 0
      %159 = vmatprep.subr.bf16.mxu0 0
      %160 = vmatpush1.bf16.msra.mxu0 0
      %161 = vmatprep.subr.bf16.mxu0 0
      %162 = vmatpush1.bf16.msra.mxu0 0
      %163 = vmatprep.subr.bf16.mxu0 0
      %164 = vmatpush1.bf16.msra.mxu0 0
      %165 = vmatprep.subr.bf16.mxu0 0
      %166 = vmatpush1.bf16.msra.mxu0 0
      %167 = vmatprep.subr.bf16.mxu0 0
      %168 = vmatpush1.bf16.msra.mxu0 0
      %169 = vmatprep.subr.bf16.mxu0 0
      %170 = vmatpush1.bf16.msra.mxu0 0
      %171 = vmatprep.subr.bf16.mxu0 0
      %172 = vmatpush1.bf16.msra.mxu0 0
      %173 = vmatprep.subr.bf16.mxu0 0
      %174 = vmatpush1.bf16.msra.mxu0 0
      %175 = vmatprep.subr.bf16.mxu0 0
      %176 = vmatpush1.bf16.msra.mxu0 0
      %177 = vmatprep.subr.bf16.mxu0 0
      %178 = vmatpush1.bf16.msra.mxu0 0
      %179 = vmatprep.subr.bf16.mxu0 0
      %180 = vmatpush1.bf16.msra.mxu0 0
      %181 = vmatprep.mubr.bf16.mxu0 0
      %182 = vmatmul.mubr.bf16.gmra.mrb[0].mxu0 %v137
      %v183 = vpop.f32.mrb[0].mxu0
      %v184 = vadd.f32 %v128, %v183
      %v185 = vpop.f32.mrb[0].mxu0
      %v186 = vadd.f32 %v132, %v185
      %v187 = vpop.f32.mrb[0].mxu0
      %v188 = vpop.f32.mrb[0].mxu0
      %189 = vdwg.mxu0
      %v190 = vmax.f32 %v184, 0.0
      %v191 = vmax.f32 %v186, 0.0
      %v192 = vpack.c.bf16 %v190, %v190
      %v193 = vpack.c.bf16 %v191, %v191
      %v194 = vld [vmem:[#allocation9] sm:$0xff]
      %v195 = vld [vmem:[#allocation9 + $0x8] sm:$0xff]
      %v196 = vld [vmem:[#allocation9 + $0x10] sm:$0xff]
      %v197 = vld [vmem:[#allocation9 + $0x18] sm:$0xff]
      %v198 = vld [vmem:[#allocation9 + $0x20] sm:$0xff]
      %v199 = vld [vmem:[#allocation9 + $0x28] sm:$0xff]
      %v200 = vld [vmem:[#allocation9 + $0x30] sm:$0xff]
      %v201 = vld [vmem:[#allocation9 + $0x38] sm:$0xff]
      %v202 = vld [vmem:[#allocation9 + $0x40] sm:$0xff]
      %v203 = vld [vmem:[#allocation9 + $0x48] sm:$0xff]
      %v204 = vld [vmem:[#allocation9 + $0x50] sm:$0xff]
      %v205 = vld [vmem:[#allocation9 + $0x58] sm:$0xff]
      %v206 = vld [vmem:[#allocation9 + $0x60] sm:$0xff]
      %v207 = vld [vmem:[#allocation9 + $0x68] sm:$0xff]
      %v208 = vld [vmem:[#allocation9 + $0x70] sm:$0xff]
      %v209 = vld [vmem:[#allocation9 + $0x78] sm:$0xff]
      %v210 = vld [vmem:[#allocation9 + $0x80] sm:$0xff]
      %v211 = vld [vmem:[#allocation9 + $0x88] sm:$0xff]
      %v212 = vld [vmem:[#allocation9 + $0x90] sm:$0xff]
      %v213 = vld [vmem:[#allocation9 + $0x98] sm:$0xff]
      %v214 = vld [vmem:[#allocation9 + $0xa0] sm:$0xff]
      %v215 = vld [vmem:[#allocation9 + $0xa8] sm:$0xff]
      %v216 = vld [vmem:[#allocation9 + $0xb0] sm:$0xff]
      %v217 = vld [vmem:[#allocation9 + $0xb8] sm:$0xff]
      %v218 = vld [vmem:[#allocation9 + $0xc0] sm:$0xff]
      %v219 = vld [vmem:[#allocation9 + $0xc8] sm:$0xff]
      %v220 = vld [vmem:[#allocation9 + $0xd0] sm:$0xff]
      %v221 = vld [vmem:[#allocation9 + $0xd8] sm:$0xff]
      %v222 = vld [vmem:[#allocation9 + $0xe0] sm:$0xff]
      %v223 = vld [vmem:[#allocation9 + $0xe8] sm:$0xff]
      %v224 = vld [vmem:[#allocation9 + $0xf0] sm:$0xff]
      %v225 = vld [vmem:[#allocation9 + $0xf8] sm:$0xff]
      %v258 = vunpack.c.l.b16 %v194
      %v259 = vunpack.c.h.b16 %v194
      %v260 = vunpack.c.l.b16 %v195
      %v261 = vunpack.c.h.b16 %v195
      %v262 = vunpack.c.l.b16 %v196
      %v263 = vunpack.c.h.b16 %v196
      %v264 = vunpack.c.l.b16 %v197
      %v265 = vunpack.c.h.b16 %v197
      %v266 = vunpack.c.l.b16 %v198
      %v267 = vunpack.c.h.b16 %v198
      %v268 = vunpack.c.l.b16 %v199
      %v269 = vunpack.c.h.b16 %v199
      %v270 = vunpack.c.l.b16 %v200
      %v271 = vunpack.c.h.b16 %v200
      %v272 = vunpack.c.l.b16 %v201
      %v273 = vunpack.c.h.b16 %v201
      %v274 = vunpack.c.l.b16 %v202
      %v275 = vunpack.c.h.b16 %v202
      %v276 = vunpack.c.l.b16 %v203
      %v277 = vunpack.c.h.b16 %v203
      %v278 = vunpack.c.l.b16 %v204
      %v279 = vunpack.c.h.b16 %v204
      %v280 = vunpack.c.l.b16 %v205
      %v281 = vunpack.c.h.b16 %v205
      %v282 = vunpack.c.l.b16 %v206
      %v283 = vunpack.c.h.b16 %v206
      %v284 = vunpack.c.l.b16 %v207
      %v285 = vunpack.c.h.b16 %v207
      %v286 = vunpack.c.l.b16 %v208
      %v287 = vunpack.c.h.b16 %v208
      %v288 = vunpack.c.l.b16 %v209
      %v289 = vunpack.c.h.b16 %v209
      %v290 = vunpack.c.l.b16 %v210
      %v291 = vunpack.c.h.b16 %v210
      %v292 = vunpack.c.l.b16 %v211
      %v293 = vunpack.c.h.b16 %v211
      %v294 = vunpack.c.l.b16 %v212
      %v295 = vunpack.c.h.b16 %v212
      %v296 = vunpack.c.l.b16 %v213
      %v297 = vunpack.c.h.b16 %v213
      %v298 = vunpack.c.l.b16 %v214
      %v299 = vunpack.c.h.b16 %v214
      %v300 = vunpack.c.l.b16 %v215
      %v301 = vunpack.c.h.b16 %v215
      %v302 = vunpack.c.l.b16 %v216
      %v303 = vunpack.c.h.b16 %v216
      %v304 = vunpack.c.l.b16 %v217
      %v305 = vunpack.c.h.b16 %v217
      %v306 = vunpack.c.l.b16 %v218
      %v307 = vunpack.c.h.b16 %v218
      %v308 = vunpack.c.l.b16 %v219
      %v309 = vunpack.c.h.b16 %v219
      %v310 = vunpack.c.l.b16 %v220
      %v311 = vunpack.c.h.b16 %v220
      %v312 = vunpack.c.l.b16 %v221
      %v313 = vunpack.c.h.b16 %v221
      %v314 = vunpack.c.l.b16 %v222
      %v315 = vunpack.c.h.b16 %v222
      %v316 = vunpack.c.l.b16 %v223
      %v317 = vunpack.c.h.b16 %v223
      %v318 = vunpack.c.l.b16 %v224
      %v319 = vunpack.c.h.b16 %v224
      %v320 = vunpack.c.l.b16 %v225
      %v321 = vunpack.c.h.b16 %v225
      %v322 = vpack.c.b16 %v260, %v258
      %v323 = vpack.c.b16 %v261, %v259
      %v324 = vpack.c.b16 %v264, %v262
      %v325 = vpack.c.b16 %v265, %v263
      %v326 = vpack.c.b16 %v268, %v266
      %v327 = vpack.c.b16 %v269, %v267
      %v328 = vpack.c.b16 %v272, %v270
      %v329 = vpack.c.b16 %v273, %v271
      %v330 = vpack.c.b16 %v276, %v274
      %v331 = vpack.c.b16 %v277, %v275
      %v332 = vpack.c.b16 %v280, %v278
      %v333 = vpack.c.b16 %v281, %v279
      %v334 = vpack.c.b16 %v284, %v282
      %v335 = vpack.c.b16 %v285, %v283
      %v336 = vpack.c.b16 %v288, %v286
      %v337 = vpack.c.b16 %v289, %v287
      %v338 = vpack.c.b16 %v292, %v290
      %v339 = vpack.c.b16 %v293, %v291
      %v340 = vpack.c.b16 %v296, %v294
      %v341 = vpack.c.b16 %v297, %v295
      %v342 = vpack.c.b16 %v300, %v298
      %v343 = vpack.c.b16 %v301, %v299
      %v344 = vpack.c.b16 %v304, %v302
      %v345 = vpack.c.b16 %v305, %v303
      %v346 = vpack.c.b16 %v308, %v306
      %v347 = vpack.c.b16 %v309, %v307
      %v348 = vpack.c.b16 %v312, %v310
      %v349 = vpack.c.b16 %v313, %v311
      %v350 = vpack.c.b16 %v316, %v314
      %v351 = vpack.c.b16 %v317, %v315
      %v352 = vpack.c.b16 %v320, %v318
      %v353 = vpack.c.b16 %v321, %v319
      %v386 = vlaneseq
      %v387 = vshrl.u32 %v386, 7
      %v388 = vsub.s32 1, %v387
      %v389 = vrot.slane %v105, %v388
      %v390 = vlaneseq
      %v391 = vshrl.u32 %v390, 7
      %v392 = vsub.s32 3, %v391
      %v393 = vrot.slane %v105, %v392
      %396 = vmatprep.subr.bf16.mxu0 %v323
      %397 = vmatpush1.bf16.msra.mxu0 %v322
      %398 = vmatprep.subr.bf16.mxu0 %v325
      %399 = vmatpush1.bf16.msra.mxu0 %v324
      %400 = vmatprep.subr.bf16.mxu0 %v327
      %401 = vmatpush1.bf16.msra.mxu0 %v326
      %402 = vmatprep.subr.bf16.mxu0 %v329
      %403 = vmatpush1.bf16.msra.mxu0 %v328
      %404 = vmatprep.subr.bf16.mxu0 %v331
      %405 = vmatpush1.bf16.msra.mxu0 %v330
      %406 = vmatprep.subr.bf16.mxu0 %v333
      %407 = vmatpush1.bf16.msra.mxu0 %v332
      %408 = vmatprep.subr.bf16.mxu0 %v335
      %409 = vmatpush1.bf16.msra.mxu0 %v334
      %410 = vmatprep.subr.bf16.mxu0 %v337
      %411 = vmatpush1.bf16.msra.mxu0 %v336
      %412 = vmatprep.subr.bf16.mxu0 %v339
      %413 = vmatpush1.bf16.msra.mxu0 %v338
      %414 = vmatprep.subr.bf16.mxu0 %v341
      %415 = vmatpush1.bf16.msra.mxu0 %v340
      %416 = vmatprep.subr.bf16.mxu0 %v343
      %417 = vmatpush1.bf16.msra.mxu0 %v342
      %418 = vmatprep.subr.bf16.mxu0 %v345
      %419 = vmatpush1.bf16.msra.mxu0 %v344
      %420 = vmatprep.subr.bf16.mxu0 %v347
      %421 = vmatpush1.bf16.msra.mxu0 %v346
      %422 = vmatprep.subr.bf16.mxu0 %v349
      %423 = vmatpush1.bf16.msra.mxu0 %v348
      %424 = vmatprep.subr.bf16.mxu0 %v351
      %425 = vmatpush1.bf16.msra.mxu0 %v350
      %426 = vmatprep.subr.bf16.mxu0 %v353
      %427 = vmatpush1.bf16.msra.mxu0 %v352
      %428 = vmatprep.mubr.bf16.mxu0 %v193
      %429 = vmatmul.mubr.bf16.gmra.mrb[0].mxu0 %v192
      %v430 = vpop.f32.mrb[0].mxu0
      %v431 = vadd.f32 %v389, %v430
      %v432 = vpop.f32.mrb[0].mxu0
      %v433 = vadd.f32 %v393, %v432
      %v434 = vpop.f32.mrb[0].mxu0
      %v435 = vpop.f32.mrb[0].mxu0
      %436 = vdwg.mxu0
      %v437 = vmax.f32 %v431, 0.0
      %v438 = vmax.f32 %v433, 0.0
      %v439 = vld [vmem:[%s7] sm:$0x3]
      %v440 = vunpack.c.l.bf16 %v439
      %v442 = vlaneseq
      %v443 = vshrl.u32 %v442, 7
      %v444 = vsub.s32 0, %v443
      %v445 = vrot.slane %v440, %v444
      %v446 = vlaneseq
      %v447 = vshrl.u32 %v446, 7
      %v448 = vsub.s32 2, %v447
      %v449 = vrot.slane %v440, %v448
      %v452 = vmul.f32 %v437, %v445
      %v453 = vmul.f32 %v438, %v449
      %vm454 = vcmask 1040384
      %v455 = vsel %vm454, %v452, 0.0
      %v456 = vsel %vm454, %v453, 0.0
      %v457 = vadd.f32 %v455, %v456
      %458 = vadd.xlane.f32.xlu0 %v457
      %v459 = vpop.xlane.xlu0 %458
      %s460 = sld [smem:[#allocation7]]
      %v461 = vstv %s460
      %v462 = vadd.f32 %v459, %v461
      %s463 = scalar_lea.vmem %s8, %s101
      %vm464 = vcmask 0
      %465 = vst.msk [vmem:[%s463] sm:$0x1] %vm464, %v462
    $region57: #{soft_q_forward.1} parent=1 // pred_fallthru
      _
    %s466 = sld [smem:[#allocation5 + $0x1]]
    %p467 = scmp.ne.s32.totalorder %s466, 0
    // Predicated region
    $region58: #{soft_q_forward.1} parent=1 // pred_check
      %p468 = pneg %p467
    $region59: #{soft_q_forward.1} parent=1 // pred_check_branch
      %470 = sbr.rel (%p468) target = $region61
    $region60: #{soft_q_forward.1} parent=1 // pred_region
      %s471 = sld [smem:[#allocation2 + $0x1]]
      %s472 = scalar_lea.vmem %s3, %s471
      %v473 = vld [vmem:[%s472] sm:$0x1]
      %v474 = vpack.c.bf16 %v473, %v473
      %s475 = scalar_lea.vmem %s5, 4
      %v476 = vld [vmem:[%s475] sm:$0xf]
      %s477 = scalar_lea.vmem [#allocation8], 24
      %v478 = vld [vmem:[%s477] sm:$0xff]
      %v479 = vld [vmem:[%s477 + $0x8] sm:$0xff]
      %v480 = vld [vmem:[%s477 + $0x10] sm:$0xff]
      %v484 = vunpack.c.l.b16 %v478
      %v485 = vunpack.c.h.b16 %v478
      %v486 = vunpack.c.l.b16 %v479
      %v487 = vunpack.c.h.b16 %v479
      %v488 = vunpack.c.l.b16 %v480
      %v489 = vunpack.c.h.b16 %v480
      %v490 = vpack.c.b16 %v486, %v484
      %v491 = vpack.c.b16 %v487, %v485
      %v492 = vpack.c.b16 %v488, %v488
      %v493 = vpack.c.b16 %v489, %v489
      %v497 = vlaneseq
      %v498 = vshrl.u32 %v497, 7
      %v499 = vsub.s32 0, %v498
      %v500 = vrot.slane %v476, %v499
      %v501 = vlaneseq
      %v502 = vshrl.u32 %v501, 7
      %v503 = vsub.s32 2, %v502
      %v504 = vrot.slane %v476, %v503
      %vm507 = vcmask 187392
      %v509 = vsel %vm507, %v474, 0
      %vm511 = vcmask 1042432
      %vm512 = vcmask 1043456
      %v513 = vsel %vm511, 4294967295, 65535
      %v514 = vsel %vm512, %v513, 0
      %v516 = vand.u32 %v492, %v514
      %v519 = vand.u32 %v493, %v514
      %521 = vmatprep.subr.bf16.mxu0 %v491
      %522 = vmatpush1.bf16.msra.mxu0 %v490
      %523 = vmatprep.subr.bf16.mxu0 %v519
      %524 = vmatpush1.bf16.msra.mxu0 %v516
      %525 = vmatprep.subr.bf16.mxu0 0
      %526 = vmatpush1.bf16.msra.mxu0 0
      %527 = vmatprep.subr.bf16.mxu0 0
      %528 = vmatpush1.bf16.msra.mxu0 0
      %529 = vmatprep.subr.bf16.mxu0 0
      %530 = vmatpush1.bf16.msra.mxu0 0
      %531 = vmatprep.subr.bf16.mxu0 0
      %532 = vmatpush1.bf16.msra.mxu0 0
      %533 = vmatprep.subr.bf16.mxu0 0
      %534 = vmatpush1.bf16.msra.mxu0 0
      %535 = vmatprep.subr.bf16.mxu0 0
      %536 = vmatpush1.bf16.msra.mxu0 0
      %537 = vmatprep.subr.bf16.mxu0 0
      %538 = vmatpush1.bf16.msra.mxu0 0
      %539 = vmatprep.subr.bf16.mxu0 0
      %540 = vmatpush1.bf16.msra.mxu0 0
      %541 = vmatprep.subr.bf16.mxu0 0
      %542 = vmatpush1.bf16.msra.mxu0 0
      %543 = vmatprep.subr.bf16.mxu0 0
      %544 = vmatpush1.bf16.msra.mxu0 0
      %545 = vmatprep.subr.bf16.mxu0 0
      %546 = vmatpush1.bf16.msra.mxu0 0
      %547 = vmatprep.subr.bf16.mxu0 0
      %548 = vmatpush1.bf16.msra.mxu0 0
      %549 = vmatprep.subr.bf16.mxu0 0
      %550 = vmatpush1.bf16.msra.mxu0 0
      %551 = vmatprep.subr.bf16.mxu0 0
      %552 = vmatpush1.bf16.msra.mxu0 0
      %553 = vmatprep.mubr.bf16.mxu0 0
      %554 = vmatmul.mubr.bf16.gmra.mrb[0].mxu0 %v509
      %v555 = vpop.f32.mrb[0].mxu0
      %v556 = vadd.f32 %v500, %v555
      %v557 = vpop.f32.mrb[0].mxu0
      %v558 = vadd.f32 %v504, %v557
      %v559 = vpop.f32.mrb[0].mxu0
      %v560 = vpop.f32.mrb[0].mxu0
      %561 = vdwg.mxu0
      %v562 = vmax.f32 %v556, 0.0
      %v563 = vmax.f32 %v558, 0.0
      %v564 = vpack.c.bf16 %v562, %v562
      %v565 = vpack.c.bf16 %v563, %v563
      %s566 = scalar_lea.vmem [#allocation9], 256
      %v567 = vld [vmem:[%s566] sm:$0xff]
      %v568 = vld [vmem:[%s566 + $0x8] sm:$0xff]
      %v569 = vld [vmem:[%s566 + $0x10] sm:$0xff]
      %v570 = vld [vmem:[%s566 + $0x18] sm:$0xff]
      %v571 = vld [vmem:[%s566 + $0x20] sm:$0xff]
      %v572 = vld [vmem:[%s566 + $0x28] sm:$0xff]
      %v573 = vld [vmem:[%s566 + $0x30] sm:$0xff]
      %v574 = vld [vmem:[%s566 + $0x38] sm:$0xff]
      %v575 = vld [vmem:[%s566 + $0x40] sm:$0xff]
      %v576 = vld [vmem:[%s566 + $0x48] sm:$0xff]
      %v577 = vld [vmem:[%s566 + $0x50] sm:$0xff]
      %v578 = vld [vmem:[%s566 + $0x58] sm:$0xff]
      %v579 = vld [vmem:[%s566 + $0x60] sm:$0xff]
      %v580 = vld [vmem:[%s566 + $0x68] sm:$0xff]
      %v581 = vld [vmem:[%s566 + $0x70] sm:$0xff]
      %v582 = vld [vmem:[%s566 + $0x78] sm:$0xff]
      %v583 = vld [vmem:[%s566 + $0x80] sm:$0xff]
      %v584 = vld [vmem:[%s566 + $0x88] sm:$0xff]
      %v585 = vld [vmem:[%s566 + $0x90] sm:$0xff]
      %v586 = vld [vmem:[%s566 + $0x98] sm:$0xff]
      %v587 = vld [vmem:[%s566 + $0xa0] sm:$0xff]
      %v588 = vld [vmem:[%s566 + $0xa8] sm:$0xff]
      %v589 = vld [vmem:[%s566 + $0xb0] sm:$0xff]
      %v590 = vld [vmem:[%s566 + $0xb8] sm:$0xff]
      %v591 = vld [vmem:[%s566 + $0xc0] sm:$0xff]
      %v592 = vld [vmem:[%s566 + $0xc8] sm:$0xff]
      %v593 = vld [vmem:[%s566 + $0xd0] sm:$0xff]
      %v594 = vld [vmem:[%s566 + $0xd8] sm:$0xff]
      %v595 = vld [vmem:[%s566 + $0xe0] sm:$0xff]
      %v596 = vld [vmem:[%s566 + $0xe8] sm:$0xff]
      %v597 = vld [vmem:[%s566 + $0xf0] sm:$0xff]
      %v598 = vld [vmem:[%s566 + $0xf8] sm:$0xff]
      %v631 = vunpack.c.l.b16 %v567
      %v632 = vunpack.c.h.b16 %v567
      %v633 = vunpack.c.l.b16 %v568
      %v634 = vunpack.c.h.b16 %v568
      %v635 = vunpack.c.l.b16 %v569
      %v636 = vunpack.c.h.b16 %v569
      %v637 = vunpack.c.l.b16 %v570
      %v638 = vunpack.c.h.b16 %v570
      %v639 = vunpack.c.l.b16 %v571
      %v640 = vunpack.c.h.b16 %v571
      %v641 = vunpack.c.l.b16 %v572
      %v642 = vunpack.c.h.b16 %v572
      %v643 = vunpack.c.l.b16 %v573
      %v644 = vunpack.c.h.b16 %v573
      %v645 = vunpack.c.l.b16 %v574
      %v646 = vunpack.c.h.b16 %v574
      %v647 = vunpack.c.l.b16 %v575
      %v648 = vunpack.c.h.b16 %v575
      %v649 = vunpack.c.l.b16 %v576
      %v650 = vunpack.c.h.b16 %v576
      %v651 = vunpack.c.l.b16 %v577
      %v652 = vunpack.c.h.b16 %v577
      %v653 = vunpack.c.l.b16 %v578
      %v654 = vunpack.c.h.b16 %v578
      %v655 = vunpack.c.l.b16 %v579
      %v656 = vunpack.c.h.b16 %v579
      %v657 = vunpack.c.l.b16 %v580
      %v658 = vunpack.c.h.b16 %v580
      %v659 = vunpack.c.l.b16 %v581
      %v660 = vunpack.c.h.b16 %v581
      %v661 = vunpack.c.l.b16 %v582
      %v662 = vunpack.c.h.b16 %v582
      %v663 = vunpack.c.l.b16 %v583
      %v664 = vunpack.c.h.b16 %v583
      %v665 = vunpack.c.l.b16 %v584
      %v666 = vunpack.c.h.b16 %v584
      %v667 = vunpack.c.l.b16 %v585
      %v668 = vunpack.c.h.b16 %v585
      %v669 = vunpack.c.l.b16 %v586
      %v670 = vunpack.c.h.b16 %v586
      %v671 = vunpack.c.l.b16 %v587
      %v672 = vunpack.c.h.b16 %v587
      %v673 = vunpack.c.l.b16 %v588
      %v674 = vunpack.c.h.b16 %v588
      %v675 = vunpack.c.l.b16 %v589
      %v676 = vunpack.c.h.b16 %v589
      %v677 = vunpack.c.l.b16 %v590
      %v678 = vunpack.c.h.b16 %v590
      %v679 = vunpack.c.l.b16 %v591
      %v680 = vunpack.c.h.b16 %v591
      %v681 = vunpack.c.l.b16 %v592
      %v682 = vunpack.c.h.b16 %v592
      %v683 = vunpack.c.l.b16 %v593
      %v684 = vunpack.c.h.b16 %v593
      %v685 = vunpack.c.l.b16 %v594
      %v686 = vunpack.c.h.b16 %v594
      %v687 = vunpack.c.l.b16 %v595
      %v688 = vunpack.c.h.b16 %v595
      %v689 = vunpack.c.l.b16 %v596
      %v690 = vunpack.c.h.b16 %v596
      %v691 = vunpack.c.l.b16 %v597
      %v692 = vunpack.c.h.b16 %v597
      %v693 = vunpack.c.l.b16 %v598
      %v694 = vunpack.c.h.b16 %v598
      %v695 = vpack.c.b16 %v633, %v631
      %v696 = vpack.c.b16 %v634, %v632
      %v697 = vpack.c.b16 %v637, %v635
      %v698 = vpack.c.b16 %v638, %v636
      %v699 = vpack.c.b16 %v641, %v639
      %v700 = vpack.c.b16 %v642, %v640
      %v701 = vpack.c.b16 %v645, %v643
      %v702 = vpack.c.b16 %v646, %v644
      %v703 = vpack.c.b16 %v649, %v647
      %v704 = vpack.c.b16 %v650, %v648
      %v705 = vpack.c.b16 %v653, %v651
      %v706 = vpack.c.b16 %v654, %v652
      %v707 = vpack.c.b16 %v657, %v655
      %v708 = vpack.c.b16 %v658, %v656
      %v709 = vpack.c.b16 %v661, %v659
      %v710 = vpack.c.b16 %v662, %v660
      %v711 = vpack.c.b16 %v665, %v663
      %v712 = vpack.c.b16 %v666, %v664
      %v713 = vpack.c.b16 %v669, %v667
      %v714 = vpack.c.b16 %v670, %v668
      %v715 = vpack.c.b16 %v673, %v671
      %v716 = vpack.c.b16 %v674, %v672
      %v717 = vpack.c.b16 %v677, %v675
      %v718 = vpack.c.b16 %v678, %v676
      %v719 = vpack.c.b16 %v681, %v679
      %v720 = vpack.c.b16 %v682, %v680
      %v721 = vpack.c.b16 %v685, %v683
      %v722 = vpack.c.b16 %v686, %v684
      %v723 = vpack.c.b16 %v689, %v687
      %v724 = vpack.c.b16 %v690, %v688
      %v725 = vpack.c.b16 %v693, %v691
      %v726 = vpack.c.b16 %v694, %v692
      %v759 = vlaneseq
      %v760 = vshrl.u32 %v759, 7
      %v761 = vsub.s32 1, %v760
      %v762 = vrot.slane %v476, %v761
      %v763 = vlaneseq
      %v764 = vshrl.u32 %v763, 7
      %v765 = vsub.s32 3, %v764
      %v766 = vrot.slane %v476, %v765
      %769 = vmatprep.subr.bf16.mxu0 %v696
      %770 = vmatpush1.bf16.msra.mxu0 %v695
      %771 = vmatprep.subr.bf16.mxu0 %v698
      %772 = vmatpush1.bf16.msra.mxu0 %v697
      %773 = vmatprep.subr.bf16.mxu0 %v700
      %774 = vmatpush1.bf16.msra.mxu0 %v699
      %775 = vmatprep.subr.bf16.mxu0 %v702
      %776 = vmatpush1.bf16.msra.mxu0 %v701
      %777 = vmatprep.subr.bf16.mxu0 %v704
      %778 = vmatpush1.bf16.msra.mxu0 %v703
      %779 = vmatprep.subr.bf16.mxu0 %v706
      %780 = vmatpush1.bf16.msra.mxu0 %v705
      %781 = vmatprep.subr.bf16.mxu0 %v708
      %782 = vmatpush1.bf16.msra.mxu0 %v707
      %783 = vmatprep.subr.bf16.mxu0 %v710
      %784 = vmatpush1.bf16.msra.mxu0 %v709
      %785 = vmatprep.subr.bf16.mxu0 %v712
      %786 = vmatpush1.bf16.msra.mxu0 %v711
      %787 = vmatprep.subr.bf16.mxu0 %v714
      %788 = vmatpush1.bf16.msra.mxu0 %v713
      %789 = vmatprep.subr.bf16.mxu0 %v716
      %790 = vmatpush1.bf16.msra.mxu0 %v715
      %791 = vmatprep.subr.bf16.mxu0 %v718
      %792 = vmatpush1.bf16.msra.mxu0 %v717
      %793 = vmatprep.subr.bf16.mxu0 %v720
      %794 = vmatpush1.bf16.msra.mxu0 %v719
      %795 = vmatprep.subr.bf16.mxu0 %v722
      %796 = vmatpush1.bf16.msra.mxu0 %v721
      %797 = vmatprep.subr.bf16.mxu0 %v724
      %798 = vmatpush1.bf16.msra.mxu0 %v723
      %799 = vmatprep.subr.bf16.mxu0 %v726
      %800 = vmatpush1.bf16.msra.mxu0 %v725
      %801 = vmatprep.mubr.bf16.mxu0 %v565
      %802 = vmatmul.mubr.bf16.gmra.mrb[0].mxu0 %v564
      %v803 = vpop.f32.mrb[0].mxu0
      %v804 = vadd.f32 %v762, %v803
      %v805 = vpop.f32.mrb[0].mxu0
      %v806 = vadd.f32 %v766, %v805
      %v807 = vpop.f32.mrb[0].mxu0
      %v808 = vpop.f32.mrb[0].mxu0
      %809 = vdwg.mxu0
      %v810 = vmax.f32 %v804, 0.0
      %v811 = vmax.f32 %v806, 0.0
      %s812 = scalar_lea.vmem %s7, 2
      %v813 = vld [vmem:[%s812] sm:$0x3]
      %v814 = vunpack.c.l.bf16 %v813
      %v816 = vlaneseq
      %v817 = vshrl.u32 %v816, 7
      %v818 = vsub.s32 0, %v817
      %v819 = vrot.slane %v814, %v818
      %v820 = vlaneseq
      %v821 = vshrl.u32 %v820, 7
      %v822 = vsub.s32 2, %v821
      %v823 = vrot.slane %v814, %v822
      %v826 = vmul.f32 %v810, %v819
      %v827 = vmul.f32 %v811, %v823
      %vm828 = vcmask 1040384
      %v829 = vsel %vm828, %v826, 0.0
      %v830 = vsel %vm828, %v827, 0.0
      %v831 = vadd.f32 %v829, %v830
      %832 = vadd.xlane.f32.xlu0 %v831
      %v833 = vpop.xlane.xlu0 %832
      %s834 = sld [smem:[#allocation7 + $0x1]]
      %v835 = vstv %s834
      %v836 = vadd.f32 %v833, %v835
      %s837 = scalar_lea.vmem %s8, %s471
      %vm838 = vcmask 0
      %839 = vst.msk [vmem:[%s837] sm:$0x1] %vm838, %v836
    $region61: #{soft_q_forward.1} parent=1 // pred_fallthru
      _
    %s840 = sld [smem:[#allocation5 + $0x2]]
    %p841 = scmp.ne.s32.totalorder %s840, 0
    // Predicated region
    $region62: #{soft_q_forward.1} parent=1 // pred_check
      %p842 = pneg %p841
    $region63: #{soft_q_forward.1} parent=1 // pred_check_branch
      %844 = sbr.rel (%p842) target = $region65
    $region64: #{soft_q_forward.1} parent=1 // pred_region
      %s845 = sld [smem:[#allocation2 + $0x2]]
      %s846 = scalar_lea.vmem %s3, %s845
      %v847 = vld [vmem:[%s846] sm:$0x1]
      %v848 = vpack.c.bf16 %v847, %v847
      %s849 = scalar_lea.vmem %s5, 8
      %v850 = vld [vmem:[%s849] sm:$0xf]
      %s851 = scalar_lea.vmem [#allocation8], 48
      %v852 = vld [vmem:[%s851] sm:$0xff]
      %v853 = vld [vmem:[%s851 + $0x8] sm:$0xff]
      %v854 = vld [vmem:[%s851 + $0x10] sm:$0xff]
      %v858 = vunpack.c.l.b16 %v852
      %v859 = vunpack.c.h.b16 %v852
      %v860 = vunpack.c.l.b16 %v853
      %v861 = vunpack.c.h.b16 %v853
      %v862 = vunpack.c.l.b16 %v854
      %v863 = vunpack.c.h.b16 %v854
      %v864 = vpack.c.b16 %v860, %v858
      %v865 = vpack.c.b16 %v861, %v859
      %v866 = vpack.c.b16 %v862, %v862
      %v867 = vpack.c.b16 %v863, %v863
      %v871 = vlaneseq
      %v872 = vshrl.u32 %v871, 7
      %v873 = vsub.s32 0, %v872
      %v874 = vrot.slane %v850, %v873
      %v875 = vlaneseq
      %v876 = vshrl.u32 %v875, 7
      %v877 = vsub.s32 2, %v876
      %v878 = vrot.slane %v850, %v877
      %vm881 = vcmask 187392
      %v883 = vsel %vm881, %v848, 0
      %vm885 = vcmask 1042432
      %vm886 = vcmask 1043456
      %v887 = vsel %vm885, 4294967295, 65535
      %v888 = vsel %vm886, %v887, 0
      %v890 = vand.u32 %v866, %v888
      %v893 = vand.u32 %v867, %v888
      %895 = vmatprep.subr.bf16.mxu0 %v865
      %896 = vmatpush1.bf16.msra.mxu0 %v864
      %897 = vmatprep.subr.bf16.mxu0 %v893
      %898 = vmatpush1.bf16.msra.mxu0 %v890
      %899 = vmatprep.subr.bf16.mxu0 0
      %900 = vmatpush1.bf16.msra.mxu0 0
      %901 = vmatprep.subr.bf16.mxu0 0
      %902 = vmatpush1.bf16.msra.mxu0 0
      %903 = vmatprep.subr.bf16.mxu0 0
      %904 = vmatpush1.bf16.msra.mxu0 0
      %905 = vmatprep.subr.bf16.mxu0 0
      %906 = vmatpush1.bf16.msra.mxu0 0
      %907 = vmatprep.subr.bf16.mxu0 0
      %908 = vmatpush1.bf16.msra.mxu0 0
      %909 = vmatprep.subr.bf16.mxu0 0
      %910 = vmatpush1.bf16.msra.mxu0 0
      %911 = vmatprep.subr.bf16.mxu0 0
      %912 = vmatpush1.bf16.msra.mxu0 0
      %913 = vmatprep.subr.bf16.mxu0 0
      %914 = vmatpush1.bf16.msra.mxu0 0
      %915 = vmatprep.subr.bf16.mxu0 0
      %916 = vmatpush1.bf16.msra.mxu0 0
      %917 = vmatprep.subr.bf16.mxu0 0
      %918 = vmatpush1.bf16.msra.mxu0 0
      %919 = vmatprep.subr.bf16.mxu0 0
      %920 = vmatpush1.bf16.msra.mxu0 0
      %921 = vmatprep.subr.bf16.mxu0 0
      %922 = vmatpush1.bf16.msra.mxu0 0
      %923 = vmatprep.subr.bf16.mxu0 0
      %924 = vmatpush1.bf16.msra.mxu0 0
      %925 = vmatprep.subr.bf16.mxu0 0
      %926 = vmatpush1.bf16.msra.mxu0 0
      %927 = vmatprep.mubr.bf16.mxu0 0
      %928 = vmatmul.mubr.bf16.gmra.mrb[0].mxu0 %v883
      %v929 = vpop.f32.mrb[0].mxu0
      %v930 = vadd.f32 %v874, %v929
      %v931 = vpop.f32.mrb[0].mxu0
      %v932 = vadd.f32 %v878, %v931
      %v933 = vpop.f32.mrb[0].mxu0
      %v934 = vpop.f32.mrb[0].mxu0
      %935 = vdwg.mxu0
      %v936 = vmax.f32 %v930, 0.0
      %v937 = vmax.f32 %v932, 0.0
      %v938 = vpack.c.bf16 %v936, %v936
      %v939 = vpack.c.bf16 %v937, %v937
      %s940 = scalar_lea.vmem [#allocation9], 512
      %v941 = vld [vmem:[%s940] sm:$0xff]
      %v942 = vld [vmem:[%s940 + $0x8] sm:$0xff]
      %v943 = vld [vmem:[%s940 + $0x10] sm:$0xff]
      %v944 = vld [vmem:[%s940 + $0x18] sm:$0xff]
      %v945 = vld [vmem:[%s940 + $0x20] sm:$0xff]
      %v946 = vld [vmem:[%s940 + $0x28] sm:$0xff]
      %v947 = vld [vmem:[%s940 + $0x30] sm:$0xff]
      %v948 = vld [vmem:[%s940 + $0x38] sm:$0xff]
      %v949 = vld [vmem:[%s940 + $0x40] sm:$0xff]
      %v950 = vld [vmem:[%s940 + $0x48] sm:$0xff]
      %v951 = vld [vmem:[%s940 + $0x50] sm:$0xff]
      %v952 = vld [vmem:[%s940 + $0x58] sm:$0xff]
      %v953 = vld [vmem:[%s940 + $0x60] sm:$0xff]
      %v954 = vld [vmem:[%s940 + $0x68] sm:$0xff]
      %v955 = vld [vmem:[%s940 + $0x70] sm:$0xff]
      %v956 = vld [vmem:[%s940 + $0x78] sm:$0xff]
      %v957 = vld [vmem:[%s940 + $0x80] sm:$0xff]
      %v958 = vld [vmem:[%s940 + $0x88] sm:$0xff]
      %v959 = vld [vmem:[%s940 + $0x90] sm:$0xff]
      %v960 = vld [vmem:[%s940 + $0x98] sm:$0xff]
      %v961 = vld [vmem:[%s940 + $0xa0] sm:$0xff]
      %v962 = vld [vmem:[%s940 + $0xa8] sm:$0xff]
      %v963 = vld [vmem:[%s940 + $0xb0] sm:$0xff]
      %v964 = vld [vmem:[%s940 + $0xb8] sm:$0xff]
      %v965 = vld [vmem:[%s940 + $0xc0] sm:$0xff]
      %v966 = vld [vmem:[%s940 + $0xc8] sm:$0xff]
      %v967 = vld [vmem:[%s940 + $0xd0] sm:$0xff]
      %v968 = vld [vmem:[%s940 + $0xd8] sm:$0xff]
      %v969 = vld [vmem:[%s940 + $0xe0] sm:$0xff]
      %v970 = vld [vmem:[%s940 + $0xe8] sm:$0xff]
      %v971 = vld [vmem:[%s940 + $0xf0] sm:$0xff]
      %v972 = vld [vmem:[%s940 + $0xf8] sm:$0xff]
      %v1005 = vunpack.c.l.b16 %v941
      %v1006 = vunpack.c.h.b16 %v941
      %v1007 = vunpack.c.l.b16 %v942
      %v1008 = vunpack.c.h.b16 %v942
      %v1009 = vunpack.c.l.b16 %v943
      %v1010 = vunpack.c.h.b16 %v943
      %v1011 = vunpack.c.l.b16 %v944
      %v1012 = vunpack.c.h.b16 %v944
      %v1013 = vunpack.c.l.b16 %v945
      %v1014 = vunpack.c.h.b16 %v945
      %v1015 = vunpack.c.l.b16 %v946
      %v1016 = vunpack.c.h.b16 %v946
      %v1017 = vunpack.c.l.b16 %v947
      %v1018 = vunpack.c.h.b16 %v947
      %v1019 = vunpack.c.l.b16 %v948
      %v1020 = vunpack.c.h.b16 %v948
      %v1021 = vunpack.c.l.b16 %v949
      %v1022 = vunpack.c.h.b16 %v949
      %v1023 = vunpack.c.l.b16 %v950
      %v1024 = vunpack.c.h.b16 %v950
      %v1025 = vunpack.c.l.b16 %v951
      %v1026 = vunpack.c.h.b16 %v951
      %v1027 = vunpack.c.l.b16 %v952
      %v1028 = vunpack.c.h.b16 %v952
      %v1029 = vunpack.c.l.b16 %v953
      %v1030 = vunpack.c.h.b16 %v953
      %v1031 = vunpack.c.l.b16 %v954
      %v1032 = vunpack.c.h.b16 %v954
      %v1033 = vunpack.c.l.b16 %v955
      %v1034 = vunpack.c.h.b16 %v955
      %v1035 = vunpack.c.l.b16 %v956
      %v1036 = vunpack.c.h.b16 %v956
      %v1037 = vunpack.c.l.b16 %v957
      %v1038 = vunpack.c.h.b16 %v957
      %v1039 = vunpack.c.l.b16 %v958
      %v1040 = vunpack.c.h.b16 %v958
      %v1041 = vunpack.c.l.b16 %v959
      %v1042 = vunpack.c.h.b16 %v959
      %v1043 = vunpack.c.l.b16 %v960
      %v1044 = vunpack.c.h.b16 %v960
      %v1045 = vunpack.c.l.b16 %v961
      %v1046 = vunpack.c.h.b16 %v961
      %v1047 = vunpack.c.l.b16 %v962
      %v1048 = vunpack.c.h.b16 %v962
      %v1049 = vunpack.c.l.b16 %v963
      %v1050 = vunpack.c.h.b16 %v963
      %v1051 = vunpack.c.l.b16 %v964
      %v1052 = vunpack.c.h.b16 %v964
      %v1053 = vunpack.c.l.b16 %v965
      %v1054 = vunpack.c.h.b16 %v965
      %v1055 = vunpack.c.l.b16 %v966
      %v1056 = vunpack.c.h.b16 %v966
      %v1057 = vunpack.c.l.b16 %v967
      %v1058 = vunpack.c.h.b16 %v967
      %v1059 = vunpack.c.l.b16 %v968
      %v1060 = vunpack.c.h.b16 %v968
      %v1061 = vunpack.c.l.b16 %v969
      %v1062 = vunpack.c.h.b16 %v969
      %v1063 = vunpack.c.l.b16 %v970
      %v1064 = vunpack.c.h.b16 %v970
      %v1065 = vunpack.c.l.b16 %v971
      %v1066 = vunpack.c.h.b16 %v971
      %v1067 = vunpack.c.l.b16 %v972
      %v1068 = vunpack.c.h.b16 %v972
      %v1069 = vpack.c.b16 %v1007, %v1005
      %v1070 = vpack.c.b16 %v1008, %v1006
      %v1071 = vpack.c.b16 %v1011, %v1009
      %v1072 = vpack.c.b16 %v1012, %v1010
      %v1073 = vpack.c.b16 %v1015, %v1013
      %v1074 = vpack.c.b16 %v1016, %v1014
      %v1075 = vpack.c.b16 %v1019, %v1017
      %v1076 = vpack.c.b16 %v1020, %v1018
      %v1077 = vpack.c.b16 %v1023, %v1021
      %v1078 = vpack.c.b16 %v1024, %v1022
      %v1079 = vpack.c.b16 %v1027, %v1025
      %v1080 = vpack.c.b16 %v1028, %v1026
      %v1081 = vpack.c.b16 %v1031, %v1029
      %v1082 = vpack.c.b16 %v1032, %v1030
      %v1083 = vpack.c.b16 %v1035, %v1033
      %v1084 = vpack.c.b16 %v1036, %v1034
      %v1085 = vpack.c.b16 %v1039, %v1037
      %v1086 = vpack.c.b16 %v1040, %v1038
      %v1087 = vpack.c.b16 %v1043, %v1041
      %v1088 = vpack.c.b16 %v1044, %v1042
      %v1089 = vpack.c.b16 %v1047, %v1045
      %v1090 = vpack.c.b16 %v1048, %v1046
      %v1091 = vpack.c.b16 %v1051, %v1049
      %v1092 = vpack.c.b16 %v1052, %v1050
      %v1093 = vpack.c.b16 %v1055, %v1053
      %v1094 = vpack.c.b16 %v1056, %v1054
      %v1095 = vpack.c.b16 %v1059, %v1057
      %v1096 = vpack.c.b16 %v1060, %v1058
      %v1097 = vpack.c.b16 %v1063, %v1061
      %v1098 = vpack.c.b16 %v1064, %v1062
      %v1099 = vpack.c.b16 %v1067, %v1065
      %v1100 = vpack.c.b16 %v1068, %v1066
      %v1133 = vlaneseq
      %v1134 = vshrl.u32 %v1133, 7
      %v1135 = vsub.s32 1, %v1134
      %v1136 = vrot.slane %v850, %v1135
      %v1137 = vlaneseq
      %v1138 = vshrl.u32 %v1137, 7
      %v1139 = vsub.s32 3, %v1138
      %v1140 = vrot.slane %v850, %v1139
      %1143 = vmatprep.subr.bf16.mxu0 %v1070
      %1144 = vmatpush1.bf16.msra.mxu0 %v1069
      %1145 = vmatprep.subr.bf16.mxu0 %v1072
      %1146 = vmatpush1.bf16.msra.mxu0 %v1071
      %1147 = vmatprep.subr.bf16.mxu0 %v1074
      %1148 = vmatpush1.bf16.msra.mxu0 %v1073
      %1149 = vmatprep.subr.bf16.mxu0 %v1076
      %1150 = vmatpush1.bf16.msra.mxu0 %v1075
      %1151 = vmatprep.subr.bf16.mxu0 %v1078
      %1152 = vmatpush1.bf16.msra.mxu0 %v1077
      %1153 = vmatprep.subr.bf16.mxu0 %v1080
      %1154 = vmatpush1.bf16.msra.mxu0 %v1079
      %1155 = vmatprep.subr.bf16.mxu0 %v1082
      %1156 = vmatpush1.bf16.msra.mxu0 %v1081
      %1157 = vmatprep.subr.bf16.mxu0 %v1084
      %1158 = vmatpush1.bf16.msra.mxu0 %v1083
      %1159 = vmatprep.subr.bf16.mxu0 %v1086
      %1160 = vmatpush1.bf16.msra.mxu0 %v1085
      %1161 = vmatprep.subr.bf16.mxu0 %v1088
      %1162 = vmatpush1.bf16.msra.mxu0 %v1087
      %1163 = vmatprep.subr.bf16.mxu0 %v1090
      %1164 = vmatpush1.bf16.msra.mxu0 %v1089
      %1165 = vmatprep.subr.bf16.mxu0 %v1092
      %1166 = vmatpush1.bf16.msra.mxu0 %v1091
      %1167 = vmatprep.subr.bf16.mxu0 %v1094
      %1168 = vmatpush1.bf16.msra.mxu0 %v1093
      %1169 = vmatprep.subr.bf16.mxu0 %v1096
      %1170 = vmatpush1.bf16.msra.mxu0 %v1095
      %1171 = vmatprep.subr.bf16.mxu0 %v1098
      %1172 = vmatpush1.bf16.msra.mxu0 %v1097
      %1173 = vmatprep.subr.bf16.mxu0 %v1100
      %1174 = vmatpush1.bf16.msra.mxu0 %v1099
      %1175 = vmatprep.mubr.bf16.mxu0 %v939
      %1176 = vmatmul.mubr.bf16.gmra.mrb[0].mxu0 %v938
      %v1177 = vpop.f32.mrb[0].mxu0
      %v1178 = vadd.f32 %v1136, %v1177
      %v1179 = vpop.f32.mrb[0].mxu0
      %v1180 = vadd.f32 %v1140, %v1179
      %v1181 = vpop.f32.mrb[0].mxu0
      %v1182 = vpop.f32.mrb[0].mxu0
      %1183 = vdwg.mxu0
      %v1184 = vmax.f32 %v1178, 0.0
      %v1185 = vmax.f32 %v1180, 0.0
      %s1186 = scalar_lea.vmem %s7, 4
      %v1187 = vld [vmem:[%s1186] sm:$0x3]
      %v1188 = vunpack.c.l.bf16 %v1187
      %v1190 = vlaneseq
      %v1191 = vshrl.u32 %v1190, 7
      %v1192 = vsub.s32 0, %v1191
      %v1193 = vrot.slane %v1188, %v1192
      %v1194 = vlaneseq
      %v1195 = vshrl.u32 %v1194, 7
      %v1196 = vsub.s32 2, %v1195
      %v1197 = vrot.slane %v1188, %v1196
      %v1200 = vmul.f32 %v1184, %v1193
      %v1201 = vmul.f32 %v1185, %v1197
      %vm1202 = vcmask 1040384
      %v1203 = vsel %vm1202, %v1200, 0.0
      %v1204 = vsel %vm1202, %v1201, 0.0
      %v1205 = vadd.f32 %v1203, %v1204
      %1206 = vadd.xlane.f32.xlu0 %v1205
      %v1207 = vpop.xlane.xlu0 %1206
      %s1208 = sld [smem:[#allocation7 + $0x2]]
      %v1209 = vstv %s1208
      %v1210 = vadd.f32 %v1207, %v1209
      %s1211 = scalar_lea.vmem %s8, %s845
      %vm1212 = vcmask 0
      %1213 = vst.msk [vmem:[%s1211] sm:$0x1] %vm1212, %v1210
    $region65: #{soft_q_forward.1} parent=1 // pred_fallthru
      _
    // Predicated region
    $region66: #{soft_q_forward.1} parent=1 // pred_check
      _
    $region67: #{soft_q_forward.1} parent=1 // pred_check_branch
      %1215 = sbr.rel (0) target = $region69
    $region68: #{soft_q_forward.1} parent=1 // pred_region
      _
    $region69: #{soft_q_forward.1} parent=1 // pred_fallthru
      _
    // Predicated region
    $region70: #{soft_q_forward.1} parent=1 // pred_check
      _
    $region71: #{soft_q_forward.1} parent=1 // pred_check_branch
      %1217 = sbr.rel (0) target = $region73
    $region72: #{soft_q_forward.1} parent=1 // pred_region
      _
    $region73: #{soft_q_forward.1} parent=1 // pred_fallthru
      _
    %1218 = vsyncpa [#allocation3], 1
    %1219 = vsyncpa [#allocation10], 1
    %1220 = vsyncpa [#allocation4], 1
    %1221 = vsyncpa [#allocation6], 1

</llo_original>
